<compile_context>
chip_gen: v7x
topology: tpu7x:2x2x1
jax: 0.10.0
libtpu: 0.0.40
codegen_flags: <defaults>
</compile_context>

<pallas_src>
import jax
import jax.numpy as jnp
from jax.experimental import pallas as pl
from jax.experimental.pallas import tpu as pltpu

_MIB = 1024 * 1024


def _gaussian_kernel(params_ref, x_ref, o_ref):
    """params_ref (SMEM, f32[2]) = [mu, -1/(2*sigma^2)]."""
    mu = params_ref[0]
    neg_inv = params_ref[1]
    x = x_ref[...].astype(jnp.float32)
    d = x - mu
    o_ref[...] = jnp.exp((d * d) * neg_inv).astype(o_ref.dtype)


def _vmem_budget():
    """(vmem_limit_bytes, max_block_bytes) sized for the current TPU gen."""
    cap = 64 * _MIB  # conservative default == v7x physical VMEM
    try:
        cap = int(pltpu.get_tpu_info().vmem_capacity_bytes)
    except Exception:
        pass
    vmem_limit = min(cap // 2, 64 * _MIB)   # 32 MiB on v7x, 64 MiB on v5e/v6e
    max_block_bytes = vmem_limit // 8       # 4 resident blocks + headroom
    return vmem_limit, max_block_bytes


def _as_2d_lane_dense(x):
    """Reshape x to a lane-dense (rows, cols) slab (free for contiguous x)."""
    n = x.size
    best = None
    for c in (2048, 1024, 512, 256, 128):
        if n % c == 0:
            if best is None:
                best = c
            if n // c >= 8:            # prefer >= 8 sublanes of rows
                best = c
                break
    if best is not None:
        return x.reshape(n // best, best)
    # Fallback: keep original last dim (lane-masked stores if not mult of 128).
    if x.ndim <= 1:
        return x.reshape(1, -1)
    return x.reshape(-1, x.shape[-1])


def _pick_blocks(rows, cols, itemsize, max_block_bytes,
                 target_block_bytes=4 * _MIB):
    """Block shape targeting ~4 MiB per block, dtype-aware sublane alignment."""
    align = {4: 8, 2: 16, 1: 32}.get(itemsize, 8)
    tgt = max(128 * itemsize, min(target_block_bytes, max_block_bytes))

    # Column tiling only when one aligned row-group of full width would blow
    # the per-block budget (wide last-dim fallback path).
    if cols <= 128 or align * cols * itemsize <= tgt:
        block_cols = cols
    else:
        block_cols = max(128, min(cols,
                                  (tgt // (align * itemsize)) // 128 * 128))

    bytes_per_row = max(1, block_cols * itemsize)
    block_rows = max(1, tgt // bytes_per_row)
    if block_rows < rows:
        # Non-full blocks must respect the dtype's packed sublane tile.
        block_rows = max(align, (block_rows // align) * align)
    block_rows = min(block_rows, rows)

    # Guarantee >= 2 grid steps when possible so the "parallel" row axis can
    # shard across megacore / v7x's two TensorCores.
    if block_rows == rows and block_cols == cols and rows >= 2 * align:
        block_rows = max(align, ((rows + 1) // 2 // align) * align)

    return block_rows, block_cols


def gaussian_kernel(x: jax.Array, mu=1.0, sigma=1.0) -> jax.Array:
    """Applies the Gaussian (RBF) kernel elementwise to x (any shape)."""
    orig_shape = x.shape
    x2 = _as_2d_lane_dense(x)
    rows, cols = x2.shape
    itemsize = jnp.dtype(x2.dtype).itemsize

    vmem_limit, max_block_bytes = _vmem_budget()
    block_rows, block_cols = _pick_blocks(rows, cols, itemsize, max_block_bytes)
    grid = (pl.cdiv(rows, block_rows), pl.cdiv(cols, block_cols))

    # Runtime scalars (no recompile per (mu, sigma)); sign folded into const.
    mu_f = jnp.asarray(mu, jnp.float32)
    sig_f = jnp.asarray(sigma, jnp.float32)
    neg_inv = -0.5 / (sig_f * sig_f)
    params = jnp.stack([mu_f, neg_inv])

    n = x.size
    cost = pl.CostEstimate(
        flops=3 * n,
        transcendentals=n,
        bytes_accessed=2 * n * itemsize,
    )

    out2 = pl.pallas_call(
        _gaussian_kernel,
        out_shape=jax.ShapeDtypeStruct((rows, cols), x.dtype),
        grid_spec=pltpu.PrefetchScalarGridSpec(
            num_scalar_prefetch=1,
            grid=grid,
            in_specs=[pl.BlockSpec((block_rows, block_cols),
                                   lambda i, j, params: (i, j))],
            out_specs=pl.BlockSpec((block_rows, block_cols),
                                   lambda i, j, params: (i, j)),
        ),
        compiler_params=pltpu.CompilerParams(
            dimension_semantics=("parallel", "parallel"),
            vmem_limit_bytes=vmem_limit,
        ),
        cost_estimate=cost,
    )(params, x2)

    return out2.reshape(orig_shape)


def gaussian_kernel_ref(x, mu=1.0, sigma=1.0):
    xf = x.astype(jnp.float32)
    return jnp.exp(-((xf - mu) ** 2) / (2.0 * sigma ** 2)).astype(x.dtype)


if __name__ == "__main__":
    key = jax.random.PRNGKey(0)
    k1, k2, k3, k4 = jax.random.split(key, 4)

    # 1) KNRM-like similarity matrix: batch=2, query_len=8, doc_len=128 (f32).
    x = jax.random.uniform(k1, (2, 8, 128), jnp.float32, -1.0, 1.0)
    out = jax.block_until_ready(gaussian_kernel(x, mu=1.0, sigma=1.0))
    ref = gaussian_kernel_ref(x, mu=1.0, sigma=1.0)
    assert out.shape == x.shape and out.dtype == x.dtype
    assert jnp.allclose(out, ref, atol=1e-5, rtol=1e-5)

    # 2) bf16 I/O + non-default (mu, sigma); reslabs lane-dense to (15, 1024).
    xb = jax.random.uniform(k2, (3, 40, 128), jnp.bfloat16, -1.0, 1.0)
    outb = jax.block_until_ready(gaussian_kernel(xb, mu=0.5, sigma=0.3))
    refb = gaussian_kernel_ref(xb, mu=0.5, sigma=0.3)
    assert outb.shape == xb.shape and outb.dtype == xb.dtype
    assert jnp.allclose(outb.astype(jnp.float32), refb.astype(jnp.float32),
                        atol=1e-2, rtol=1e-2)

    # 3) Multi-step row grid + partial edge block: (4, 40, 160) f32 reslabs to
    #    (25, 1024); the >=2-step rule yields row blocks of 8 (last is partial).
    xc = jax.random.uniform(k3, (4, 40, 160), jnp.float32, -0.5, 1.5)
    outc = jax.block_until_ready(gaussian_kernel(xc, mu=0.2, sigma=0.7))
    refc = gaussian_kernel_ref(xc, mu=0.2, sigma=0.7)
    assert jnp.allclose(outc, refc, atol=1e-5, rtol=1e-5)

    # 4) Fallback path: element count not a multiple of 128 -> keep last dim.
    xd = jax.random.uniform(k4, (2, 5, 40), jnp.float32, -1.0, 1.0)
    outd = jax.block_until_ready(gaussian_kernel(xd, mu=-0.3, sigma=1.5))
    refd = gaussian_kernel_ref(xd, mu=-0.3, sigma=1.5)
    assert jnp.allclose(outd, refd, atol=1e-5, rtol=1e-5)

    print("KERNEL_OK")
</pallas_src>

<mosaic_0001>
module attributes {stable_mosaic.version = 11 : i64} {
  func.func @_gaussian_kernel(%arg0: i32, %arg1: i32, %arg2: memref<2xf32, #tpu.memory_space<smem>>, %arg3: memref<8x256xf32, #tpu.memory_space<vmem>>, %arg4: memref<8x256xf32, #tpu.memory_space<vmem>>) attributes {dimension_semantics = [#tpu.dimension_semantics<parallel>, #tpu.dimension_semantics<parallel>], iteration_bounds = array<i64: 1, 1>, scalar_prefetch = 1 : i64, scratch_operands = 0 : i64, tpu.core_type = #tpu.core_type<tc>, window_params = [{transform_indices = @transform_0, window_bounds = array<i64: 8, 256>}, {transform_indices = @transform_1, window_bounds = array<i64: 8, 256>}]} {
    %c0 = arith.constant 0 : index
    %0 = memref.load %arg2[%c0] : memref<2xf32, #tpu.memory_space<smem>>
    %c1 = arith.constant 1 : index
    %1 = memref.load %arg2[%c1] : memref<2xf32, #tpu.memory_space<smem>>
    %c0_0 = arith.constant 0 : index
    %c0_1 = arith.constant 0 : index
    %2 = vector.load %arg3[%c0_0, %c0_1] : memref<8x256xf32, #tpu.memory_space<vmem>>, vector<8x256xf32>
    %3 = vector.broadcast %0 : f32 to vector<8x256xf32>
    %4 = arith.subf %2, %3 : vector<8x256xf32>
    %5 = arith.mulf %4, %4 : vector<8x256xf32>
    %6 = vector.broadcast %1 : f32 to vector<8x256xf32>
    %7 = arith.mulf %5, %6 : vector<8x256xf32>
    %8 = math.exp %7 : vector<8x256xf32>
    %c0_2 = arith.constant 0 : index
    %c0_3 = arith.constant 0 : index
    %9 = vector.load %arg4[%c0_2, %c0_3] : memref<8x256xf32, #tpu.memory_space<vmem>>, vector<8x256xf32>
    tpu.vector_store %arg4[%c0_2, %c0_3], %8 {strides = array<i32>} : memref<8x256xf32, #tpu.memory_space<vmem>>, vector<8x256xf32>,
    return
  }
  func.func @transform_0(%arg0: i32, %arg1: i32, %arg2: memref<2xf32, #tpu.memory_space<smem>>) -> (i32, i32) {
    %c0_i32 = arith.constant 0 : i32
    return %arg0, %arg1 : i32, i32
  }
  func.func @transform_1(%arg0: i32, %arg1: i32, %arg2: memref<2xf32, #tpu.memory_space<smem>>) -> (i32, i32) {
    %c0_i32 = arith.constant 0 : i32
    return %arg0, %arg1 : i32, i32
  }
}

</mosaic_0001>

<llo_original>
// kernel: tpu_custom_call.1
$region0: #{tpu_custom_call.1}
  #allocation0 [shape = 'u32[]', space=smem, size = 0x4, offset = 0x4, fixed_abs, tag = 'smem constant byte address 0x4 - core index']
  #allocation1 [shape = 'u32[144,128]{1,0:T(1,128)}', space=vmem, size = 0x12000, scoped, tag = 'internal scratch']
  #allocation2 [shape = 's32[1]{0}', space=sflag, size = 0x4, scoped, tag = 'scoped memory for tpu_custom_call.1']
  #allocation3 [shape = 'u8[512]{0}', space=smem, size = 0x200, scoped, tag = 'prefetched SMEM operand 0']
  %s0 = inlined_call_operand.hbm [shape: f32[2], index: 0, kind: input, shape index: {}]
  %s1 = inlined_call_operand.hbm [shape: f32[8,256], index: 1, kind: input, shape index: {}]
  %s2 = inlined_call_operand.hbm [shape: f32[8,256], index: 2, kind: output, shape index: {}]
  %s3 = sld [smem:[#allocation0]]
  $region18: #{tpu_custom_call.1} parent=0
    _
  %s5 = ssub.s32 1, %s3
  %s6 = scalar_select 0, %s5, %s3
  %8 = dma.hbm_to_smem %s0, 16, [#allocation3], [#allocation2]
  %9 = dma.done [#allocation2], 16
  %10 = sfence
  $region1: #{tpu_custom_call.1} parent=0
    #allocation4 [shape = 'u8[8192]{0}', space=vmem, size = 0x2000, scoped, tag = 'input window, operand 1, single buffered']
    #allocation5 [shape = 's32[1]{0}', space=sflag, size = 0x4, scoped, tag = 'scoped memory for tpu_custom_call.1']
    #allocation6 [shape = 's32[1]{0}', space=sflag, size = 0x4, scoped, tag = 'scoped memory for tpu_custom_call.1']
    #allocation7 [shape = 'u8[8192]{0}', space=vmem, size = 0x2000, scoped, tag = 'output window, operand 0, single buffered']
    %11 = vsyncpa [#allocation5], 0
    %12 = vsyncpa [#allocation6], 0
    // Predicated region
    $region2: #{tpu_custom_call.1} parent=1 // pred_check
      _
    $region3: #{tpu_custom_call.1} parent=1 // pred_check_branch
      %14 = sbr.rel (0) target = $region5
    $region4: #{tpu_custom_call.1} parent=1 // pred_region
      %s16 = ssub.s32 256, 256
      %17 = vsyncadd [#allocation5], %s16
      %s19 = sshll.u32 [#allocation4], 4
      %s20 = int_to_ptr.vmem [resolvable:$true] %s19
      %22 = dma.hbm_to_vmem [thread:$0]  %s1, 256, %s20, [#allocation5]
    $region5: #{tpu_custom_call.1} parent=1 // pred_fallthru
      _
    // Predicated region
    $region6: #{tpu_custom_call.1} parent=1 // pred_check
      _
    $region7: #{tpu_custom_call.1} parent=1 // pred_check_branch
      %24 = sbr.rel (0) target = $region9
    $region8: #{tpu_custom_call.1} parent=1 // pred_region
      %25 = dma.done [#allocation5], 256
    $region9: #{tpu_custom_call.1} parent=1 // pred_fallthru
      _
    %s26 = sld [smem:[#allocation3]]
    %s27 = sld [smem:[#allocation3 + $0x1]]
    %v28 = vld [vmem:[#allocation4] sm:$0xff]
    %v29 = vld [vmem:[#allocation4 + $0x8] sm:$0xff]
    %v30 = vstv %s26
    %v31 = vsub.f32 %v28, %v30
    %v32 = vsub.f32 %v29, %v30
    %v33 = vmul.f32 %v31, %v31
    %v34 = vmul.f32 %v32, %v32
    %v35 = vstv %s27
    %v36 = vmul.f32 %v33, %v35
    %v37 = vmul.f32 %v34, %v35
    %v38 = vmul.f32 %v36, 1.442695
    %v39 = vpow.pop %v38
    %v40 = vmul.f32 %v37, 1.442695
    %v41 = vpow.pop %v40
    %42 = vst [vmem:[#allocation7] sm:$0xff] %v39
    %43 = vst [vmem:[#allocation7 + $0x8] sm:$0xff] %v41
    // Predicated region
    $region10: #{tpu_custom_call.1} parent=1 // pred_check
      _
    $region11: #{tpu_custom_call.1} parent=1 // pred_check_branch
      %45 = sbr.rel (0) target = $region13
    $region12: #{tpu_custom_call.1} parent=1 // pred_region
      %s47 = ssub.s32 256, 256
      %48 = vsyncadd [#allocation6], %s47
      %s50 = sshll.u32 [#allocation7], 4
      %s51 = int_to_ptr.vmem [resolvable:$true] %s50
      %53 = dma.vmem_to_hbm [thread:$0]  %s51, 256, %s2, [#allocation6]
    $region13: #{tpu_custom_call.1} parent=1 // pred_fallthru
      _
    // Predicated region
    $region14: #{tpu_custom_call.1} parent=1 // pred_check
      _
    $region15: #{tpu_custom_call.1} parent=1 // pred_check_branch
      %55 = sbr.rel (0) target = $region17
    $region16: #{tpu_custom_call.1} parent=1 // pred_region
      %56 = dma.done [#allocation6], 256
    $region17: #{tpu_custom_call.1} parent=1 // pred_fallthru
      _
    %57 = vsyncpa [#allocation5], 1
    %58 = vsyncpa [#allocation6], 1

</llo_original>
